<compile_context>
chip_gen: v5e
topology: v5e:2x2
jax: 0.10.0
libtpu: 0.0.40
codegen_flags: <defaults>
</compile_context>

<pallas_src>
import jax
import jax.numpy as jnp
from jax.experimental import pallas as pl
from jax.experimental.pallas import tpu as pltpu


_LANE = 128
_SUBLANE = 8
# Cap on the batch tile: keeps the one-hot query-broadcast matmul
# (2*H*TB*L flops/step, quadratic in TB) and its (TB, TB*N) operand bounded so the
# MXU never becomes the binding unit on v5e/v6e/v7x — the kernel stays HBM-bound.
_TB_CAP = 256


def _round_up(x, m):
    return -(-x // m) * m


def _padded_2d_bytes(rows, cols, itemsize):
    """VMEM bytes of a 2D buffer after (8, 128) tile padding."""
    return _round_up(rows, _SUBLANE) * _round_up(cols, _LANE) * itemsize


def _vmem_capacity_bytes():
    try:
        return int(pltpu.get_tpu_info().vmem_capacity_bytes)
    except Exception:
        return 64 * 1024 * 1024  # v7x per-core VMEM: the smallest of v5e/v6e/v7x


def _footprint_bytes(tb, B, N, H, itemsize):
    """Complete VMEM estimate for batch tile `tb`: double-buffered input/output
    blocks (resident operands are also double-buffered — pl.Buffered(1) is not
    used, so count both copies) plus f32 compute temporaries and a fixed margin."""
    L = tb * N
    tbp = tb if tb == B else _round_up(tb, _SUBLANE)
    inputs = (
        _padded_2d_bytes(H, L, itemsize)       # static tile
        + _padded_2d_bytes(tbp, H, itemsize)   # projected-query tile
        + _padded_2d_bytes(H, H, itemsize)     # w_ref
        + _padded_2d_bytes(H, 1, itemsize)     # b_ref
        + _padded_2d_bytes(tbp, L, itemsize)   # one-hot broadcast matrix
        + _padded_2d_bytes(H, 1, itemsize)     # v
    )
    outputs = (
        _padded_2d_bytes(H, L, itemsize)       # e tile
        + _padded_2d_bytes(1, L, itemsize)     # logits tile
    )
    temps = 3 * _padded_2d_bytes(H, L, 4)      # f32 e / q_full / tanh intermediates
    return 2 * (inputs + outputs) + temps + (1 << 20)


def _pick_tb(B, N, H, itemsize, budget):
    """Batch-tile size (perf-review policy).

    * Largest lane-aligned (TB*N % 128 == 0) divisor of B whose full VMEM
      footprint fits `budget` -> fewest grid steps / biggest DMA bursts
      (the kernel is HBM-bound).
    * Among those, keep G = B/TB >= 2 when the tile already has >= 512 lanes,
      so v7x's two TensorCores are both fed (near-free on 1-TC v5e/v6e).
    * TB <= _TB_CAP bounds the query-broadcast matmul.
    * Last resort: a single full-extent block (the only legal non-128-multiple
      lane width), still VMEM-checked — no more unchecked fallback.
    """
    divisors = [d for d in range(1, B + 1) if B % d == 0]

    def fits(d):
        return _footprint_bytes(d, B, N, H, itemsize) <= budget

    aligned = [d for d in divisors
               if (d * N) % _LANE == 0 and d <= _TB_CAP and fits(d)]
    if aligned:
        multi = [d for d in aligned if B // d >= 2 and d * N >= 4 * _LANE]
        return max(multi) if multi else max(aligned)
    if fits(B):
        return B
    # TODO(synk): implement lane-padded batch grouping for shapes where no
    # 128-aligned batch tile exists and the full-extent block overflows VMEM.
    raise ValueError(
        f"AttentionCritic kernel: no VMEM-feasible batch tile for "
        f"B={B}, H={H}, N={N} (budget={budget} bytes).")


def _attention_critic_kernel(xs_ref, q_ref, wref_ref, bref_ref, s_ref,
                             v_ref, e_ref, logits_ref):
    x = xs_ref[...]                                     # (H, L) lane-dense tile

    # project_ref (Conv1d, kernel_size=1): one (H,H) x (H,L) MXU matmul.
    # H is deliberately NOT padded to the MXU native dim: the MXU is not the
    # saturating slot (kernel is HBM-bound).
    e = jnp.dot(wref_ref[...], x,
                preferred_element_type=jnp.float32) + bref_ref[...]     # (H, L)

    # Broadcast each batch's projected query over its N node lanes via a small
    # one-hot expansion matmul.  TB is capped in _pick_tb so this stays a bounded
    # fraction of the projection matmul; a fully fused augmented-weight MXU pass
    # is not possible because `e` alone is also a kernel output.
    q_full = jnp.dot(q_ref[...].T, s_ref[...],
                     preferred_element_type=jnp.float32)                # (H, L)

    t = jnp.tanh(e + q_full)                            # VPU add + EUP tanh (f32)

    # u[m] = sum_h v[h] * t[h, m]: VPU multiply + sublane (XLU) reduction,
    # overlapping the MXU instead of a degenerate 1-row matmul.
    u = jnp.sum(v_ref[...] * t, axis=0, keepdims=True)                  # (1, L)

    e_ref[...] = e.astype(e_ref.dtype)
    # TODO(synk): if downstream tolerates bf16 e, casting here would cut ~1/3 of
    # kernel HBM traffic (keep f32 accumulation / tanh).
    logits_ref[0] = u.astype(logits_ref.dtype)


def attention_critic_forward(static_hidden, decoder_hidden, params,
                             use_tanh=False, C=10.0):
    B, H, N = static_hidden.shape
    dtype = static_hidden.dtype
    itemsize = jnp.dtype(dtype).itemsize

    w_ref = params["w_ref"].astype(dtype)               # (H, H) Conv1d weight (k squeezed)
    b_ref = params["b_ref"].astype(dtype)               # (H, 1) Conv1d bias (column)
    w_q = params["w_q"].astype(dtype)                   # (H, H) Linear weight (out, in)
    b_q = params["b_q"].astype(dtype)                   # (H, 1) Linear bias (column)
    v_col = params["v"].reshape(H, 1).astype(dtype)     # (H, 1) attention vector

    capacity = _vmem_capacity_bytes()
    budget = capacity // 2                               # tile budget w/ pipeline headroom
    TB = _pick_tb(B, N, H, itemsize, budget)
    G = B // TB
    L = TB * N
    TBp = TB if TB == B else _round_up(TB, _SUBLANE)     # sublane-legal query tile rows

    footprint = _footprint_bytes(TB, B, N, H, itemsize)
    vmem_limit = int(max(32 << 20, min(3 * capacity // 4, footprint + (8 << 20))))

    # ---- wrapper-side layout plumbing + query-projection hoist (plain XLA) ----
    # TODO(synk): the (B,H,N)<->(H,B*N) transposes are each an extra HBM pass; they
    # are kept because the module contract requires e in (B,H,N) and an in-kernel
    # relayout of N(=16)-lane slabs is a lowering risk at N < 128.  For N % 128 == 0
    # a native-layout kernel (block (TB,H,N), no transposes) is the better variant.
    xs = jnp.transpose(static_hidden, (1, 0, 2)).reshape(H, B * N)

    # project_query for ALL batch rows at once, f32 accumulation pinned.
    q_all = (jnp.dot(decoder_hidden, w_q.T, preferred_element_type=jnp.float32)
             + b_q[:, 0][None, :].astype(jnp.float32)).astype(dtype)    # (B, H)
    if TBp == TB:
        q_in = q_all                                                     # (G*TB, H)
    else:
        q_pad = jnp.zeros((G, TBp, H), dtype)
        q_in = q_pad.at[:, :TB, :].set(q_all.reshape(G, TB, H)).reshape(G * TBp, H)

    # One-hot expansion: row b has ones on batch b's N node lanes (pad rows zero).
    s_mat = jnp.repeat(jnp.eye(TBp, TB, dtype=dtype), N, axis=1)         # (TBp, L)

    cost = pl.CostEstimate(
        flops=int(2 * H * (H + TBp) * B * N + 5 * H * B * N),
        transcendentals=int(H * B * N),
        bytes_accessed=int(itemsize * (2 * H * B * N + B * N + B * H
                                       + H * H + TBp * L)),
    )

    e_flat, logits3 = pl.pallas_call(
        _attention_critic_kernel,
        out_shape=(
            jax.ShapeDtypeStruct((H, B * N), dtype),     # e, lane-dense layout
            jax.ShapeDtypeStruct((G, 1, L), dtype),      # logits rows, lane-dense
        ),
        grid_spec=pltpu.PrefetchScalarGridSpec(
            num_scalar_prefetch=0,
            grid=(G,),
            in_specs=[
                pl.BlockSpec((H, L), lambda i: (0, i)),        # static tile
                pl.BlockSpec((TBp, H), lambda i: (i, 0)),      # per-step projected queries
                pl.BlockSpec((H, H), lambda i: (0, 0)),        # w_ref (resident)
                pl.BlockSpec((H, 1), lambda i: (0, 0)),        # b_ref (resident)
                pl.BlockSpec((TBp, L), lambda i: (0, 0)),      # one-hot expansion (resident)
                pl.BlockSpec((H, 1), lambda i: (0, 0)),        # v (resident)
            ],
            out_specs=[
                pl.BlockSpec((H, L), lambda i: (0, i)),        # e tile
                pl.BlockSpec((1, 1, L), lambda i: (i, 0, 0)),  # logits tile
            ],
        ),
        compiler_params=pltpu.CompilerParams(
            dimension_semantics=("parallel",),
            vmem_limit_bytes=vmem_limit),
        cost_estimate=cost,
    )(xs, q_in, w_ref, b_ref, s_mat, v_col)

    # Undo the layout plumbing (logits reshape is free; e needs one transpose back).
    e = e_flat.reshape(H, B, N).transpose(1, 0, 2)                        # (B, H, N)
    logits = logits3.reshape(B, N)
    if use_tanh:
        # TODO(synk): torch module references undefined self.tanh; using C * tanh(u).
        logits = C * jnp.tanh(logits)
    return e, logits


def _reference(static_hidden, decoder_hidden, params):
    # Pure-JAX reference of the PyTorch forward (use_tahn=False path).
    e = (jnp.einsum('oi,bin->bon', params["w_ref"], static_hidden)
         + params["b_ref"][None, :, :])
    q = decoder_hidden @ params["w_q"].T + params["b_q"][:, 0][None, :]
    t = jnp.tanh(e + q[:, :, None])
    u = jnp.einsum('h,bhn->bn', params["v"][0], t)
    return e, u


if __name__ == "__main__":
    # batch, hidden, nodes — picker chooses the largest aligned batch tile.
    B, H, N = 16, 32, 16
    key = jax.random.PRNGKey(0)
    k_static, k_dec, k_wref, k_bref, k_wq, k_bq, k_v = jax.random.split(key, 7)

    static_hidden = jax.random.normal(k_static, (B, H, N), dtype=jnp.float32)
    decoder_hidden = jax.random.normal(k_dec, (B, H), dtype=jnp.float32)

    # Deterministic synthetic parameters (shapes per the torch __init__).
    params = {
        "w_ref": 0.1 * jax.random.normal(k_wref, (H, H), dtype=jnp.float32),
        "b_ref": 0.1 * jax.random.normal(k_bref, (H, 1), dtype=jnp.float32),
        "w_q": 0.1 * jax.random.normal(k_wq, (H, H), dtype=jnp.float32),
        "b_q": 0.1 * jax.random.normal(k_bq, (H, 1), dtype=jnp.float32),
        # torch init is zeros; use a deterministic nonzero v so logits are nontrivial
        "v": 0.1 * jax.random.normal(k_v, (1, H), dtype=jnp.float32),
    }

    e, logits = attention_critic_forward(static_hidden, decoder_hidden, params)
    jax.block_until_ready((e, logits))

    e_ref, logits_ref = _reference(static_hidden, decoder_hidden, params)
    assert e.shape == (B, H, N) and logits.shape == (B, N)
    assert jnp.allclose(e, e_ref, atol=1e-4), "e mismatch"
    assert jnp.allclose(logits, logits_ref, atol=1e-4), "logits mismatch"

    print("KERNEL_OK")
</pallas_src>

<mosaic_0001>
module attributes {stable_mosaic.version = 11 : i64} {
  func.func @_attention_critic_kernel(%arg0: i32, %arg1: memref<32x256xf32, #tpu.memory_space<vmem>>, %arg2: memref<16x32xf32, #tpu.memory_space<vmem>>, %arg3: memref<32x32xf32, #tpu.memory_space<vmem>>, %arg4: memref<32x1xf32, #tpu.memory_space<vmem>>, %arg5: memref<16x256xf32, #tpu.memory_space<vmem>>, %arg6: memref<32x1xf32, #tpu.memory_space<vmem>>, %arg7: memref<32x256xf32, #tpu.memory_space<vmem>>, %arg8: memref<1x1x256xf32, #tpu.memory_space<vmem>>) attributes {dimension_semantics = [#tpu.dimension_semantics<parallel>], iteration_bounds = array<i64: 1>, scalar_prefetch = 0 : i64, scratch_operands = 0 : i64, tpu.core_type = #tpu.core_type<tc>, window_params = [{transform_indices = @transform_0, window_bounds = array<i64: 32, 256>}, {transform_indices = @transform_1, window_bounds = array<i64: 16, 32>}, {pipeline_mode = #tpu.pipeline_mode<synchronous>, transform_indices = @transform_2, window_bounds = array<i64: 32, 32>}, {pipeline_mode = #tpu.pipeline_mode<synchronous>, transform_indices = @transform_3, window_bounds = array<i64: 32, 1>}, {pipeline_mode = #tpu.pipeline_mode<synchronous>, transform_indices = @transform_4, window_bounds = array<i64: 16, 256>}, {pipeline_mode = #tpu.pipeline_mode<synchronous>, transform_indices = @transform_5, window_bounds = array<i64: 32, 1>}, {transform_indices = @transform_6, window_bounds = array<i64: 32, 256>}, {transform_indices = @transform_7, window_bounds = array<i64: 1, 1, 256>}]} {
    %c0 = arith.constant 0 : index
    %c0_0 = arith.constant 0 : index
    %0 = vector.load %arg1[%c0, %c0_0] : memref<32x256xf32, #tpu.memory_space<vmem>>, vector<32x256xf32>
    %c0_1 = arith.constant 0 : index
    %c0_2 = arith.constant 0 : index
    %1 = vector.load %arg3[%c0_1, %c0_2] : memref<32x32xf32, #tpu.memory_space<vmem>>, vector<32x32xf32>
    %cst = arith.constant dense<0.000000e+00> : vector<32x256xf32>
    %2 = tpu.matmul %1, %0, %cst {dimension_numbers = #tpu.dot_dimension_numbers<[1], [0], [0], [1], [0, 0, 1, 1], [], []>} : vector<32x32xf32>, vector<32x256xf32>, vector<32x256xf32> -> vector<32x256xf32>
    %c0_3 = arith.constant 0 : index
    %c0_4 = arith.constant 0 : index
    %3 = vector.load %arg4[%c0_3, %c0_4] : memref<32x1xf32, #tpu.memory_space<vmem>>, vector<32x1xf32>
    %4 = vector.broadcast %3 : vector<32x1xf32> to vector<32x256xf32>
    %5 = arith.addf %2, %4 : vector<32x256xf32>
    %c0_5 = arith.constant 0 : index
    %c0_6 = arith.constant 0 : index
    %6 = vector.load %arg2[%c0_5, %c0_6] : memref<16x32xf32, #tpu.memory_space<vmem>>, vector<16x32xf32>
    %7 = tpu.transpose %6, [1, 0] : vector<16x32xf32> -> vector<32x16xf32>
    %c0_7 = arith.constant 0 : index
    %c0_8 = arith.constant 0 : index
    %8 = vector.load %arg5[%c0_7, %c0_8] : memref<16x256xf32, #tpu.memory_space<vmem>>, vector<16x256xf32>
    %cst_9 = arith.constant dense<0.000000e+00> : vector<32x256xf32>
    %9 = tpu.matmul %7, %8, %cst_9 {dimension_numbers = #tpu.dot_dimension_numbers<[1], [0], [0], [1], [0, 0, 1, 1], [], []>} : vector<32x16xf32>, vector<16x256xf32>, vector<32x256xf32> -> vector<32x256xf32>
    %10 = arith.addf %5, %9 : vector<32x256xf32>
    %11 = math.tanh %10 : vector<32x256xf32>
    %c0_10 = arith.constant 0 : index
    %c0_11 = arith.constant 0 : index
    %12 = vector.load %arg6[%c0_10, %c0_11] : memref<32x1xf32, #tpu.memory_space<vmem>>, vector<32x1xf32>
    %13 = vector.broadcast %12 : vector<32x1xf32> to vector<32x256xf32>
    %14 = arith.mulf %13, %11 : vector<32x256xf32>
    %cst_12 = arith.constant dense<0.000000e+00> : vector<256xf32>
    %15 = vector.multi_reduction <add>, %14, %cst_12 [0] : vector<32x256xf32> to vector<256xf32>
    %16 = vector.shape_cast %15 : vector<256xf32> to vector<1x256xf32>
    %c0_13 = arith.constant 0 : index
    %c0_14 = arith.constant 0 : index
    %17 = vector.load %arg7[%c0_13, %c0_14] : memref<32x256xf32, #tpu.memory_space<vmem>>, vector<32x256xf32>
    tpu.vector_store %arg7[%c0_13, %c0_14], %5 {strides = array<i32>} : memref<32x256xf32, #tpu.memory_space<vmem>>, vector<32x256xf32>,
    %c0_15 = arith.constant 0 : index
    %c0_16 = arith.constant 0 : index
    %c0_17 = arith.constant 0 : index
    %18 = vector.load %arg8[%c0_15, %c0_16, %c0_17] : memref<1x1x256xf32, #tpu.memory_space<vmem>>, vector<1x1x256xf32>
    %19 = vector.shape_cast %18 : vector<1x1x256xf32> to vector<1x256xf32>
    %20 = vector.shape_cast %16 : vector<1x256xf32> to vector<1x1x256xf32>
    tpu.vector_store %arg8[%c0_15, %c0_16, %c0_17], %20 {strides = array<i32>} : memref<1x1x256xf32, #tpu.memory_space<vmem>>, vector<1x1x256xf32>,
    return
  }
  func.func @transform_0(%arg0: i32) -> (i32, i32) {
    %c0_i32 = arith.constant 0 : i32
    %c0_i32_0 = arith.constant 0 : i32
    return %c0_i32, %arg0 : i32, i32
  }
  func.func @transform_1(%arg0: i32) -> (i32, i32) {
    %c0_i32 = arith.constant 0 : i32
    %c0_i32_0 = arith.constant 0 : i32
    return %arg0, %c0_i32 : i32, i32
  }
  func.func @transform_2(%arg0: i32) -> (i32, i32) {
    %c0_i32 = arith.constant 0 : i32
    %c0_i32_0 = arith.constant 0 : i32
    %c0_i32_1 = arith.constant 0 : i32
    return %c0_i32, %c0_i32_0 : i32, i32
  }
  func.func @transform_3(%arg0: i32) -> (i32, i32) {
    %c0_i32 = arith.constant 0 : i32
    %c0_i32_0 = arith.constant 0 : i32
    %c0_i32_1 = arith.constant 0 : i32
    return %c0_i32, %c0_i32_0 : i32, i32
  }
  func.func @transform_4(%arg0: i32) -> (i32, i32) {
    %c0_i32 = arith.constant 0 : i32
    %c0_i32_0 = arith.constant 0 : i32
    %c0_i32_1 = arith.constant 0 : i32
    return %c0_i32, %c0_i32_0 : i32, i32
  }
  func.func @transform_5(%arg0: i32) -> (i32, i32) {
    %c0_i32 = arith.constant 0 : i32
    %c0_i32_0 = arith.constant 0 : i32
    %c0_i32_1 = arith.constant 0 : i32
    return %c0_i32, %c0_i32_0 : i32, i32
  }
  func.func @transform_6(%arg0: i32) -> (i32, i32) {
    %c0_i32 = arith.constant 0 : i32
    %c0_i32_0 = arith.constant 0 : i32
    return %c0_i32, %arg0 : i32, i32
  }
  func.func @transform_7(%arg0: i32) -> (i32, i32, i32) {
    %c0_i32 = arith.constant 0 : i32
    %c0_i32_0 = arith.constant 0 : i32
    %c0_i32_1 = arith.constant 0 : i32
    return %arg0, %c0_i32, %c0_i32_0 : i32, i32, i32
  }
}

</mosaic_0001>

<llo_original>
// kernel: tpu_custom_call.1
$region0: #{tpu_custom_call.1}
  #allocation0 [shape = 'u32[]', space=smem, size = 0x4, offset = 0x4, fixed_abs, tag = 'smem constant byte address 0x4 - core index']
  #allocation1 [shape = 'u32[72,128]{1,0:T(1,128)}', space=vmem, size = 0x9000, scoped, tag = 'internal scratch']
  %s0 = inlined_call_operand.vmem [shape: f32[32,256], index: 0, kind: input, shape index: {}]
  %s1 = inlined_call_operand.hbm [shape: f32[16,32], index: 1, kind: input, shape index: {}]
  %s2 = inlined_call_operand.hbm [shape: f32[32,32], index: 2, kind: input, shape index: {}]
  %s3 = inlined_call_operand.vmem [shape: f32[32,1], index: 3, kind: input, shape index: {}]
  %s4 = inlined_call_operand.hbm [shape: f32[16,256], index: 4, kind: input, shape index: {}]
  %s5 = inlined_call_operand.vmem [shape: f32[32,1], index: 5, kind: input, shape index: {}]
  %s6 = inlined_call_operand.hbm [shape: f32[32,256], index: 6, kind: output, shape index: {0}]
  %s7 = inlined_call_operand.hbm [shape: f32[1,1,256], index: 7, kind: output, shape index: {1}]
  %8 = xla_tuple %s6, %s7
  %s9 = sld [smem:[#allocation0]]
  $region54: #{tpu_custom_call.1} parent=0
    _
  %s11 = ssub.s32 1, %s9
  %s12 = scalar_select 0, %s11, %s9
  $region1: #{tpu_custom_call.1} parent=0
    #allocation2 [shape = 'u8[8192]{0}', space=vmem, size = 0x2000, scoped, tag = 'input window, operand 1, single buffered']
    #allocation3 [shape = 's32[1]{0}', space=sflag, size = 0x4, scoped, tag = 'scoped memory for tpu_custom_call.1']
    #allocation4 [shape = 's32[1]{0}', space=sflag, size = 0x4, scoped, tag = 'scoped memory for tpu_custom_call.1']
    #allocation5 [shape = 'u8[16384]{0}', space=vmem, size = 0x4000, scoped, tag = 'input window, operand 2, single buffered']
    #allocation6 [shape = 's32[1]{0}', space=sflag, size = 0x4, scoped, tag = 'scoped memory for tpu_custom_call.1']
    #allocation7 [shape = 'u8[16384]{0}', space=vmem, size = 0x4000, scoped, tag = 'input window, operand 4, single buffered']
    #allocation8 [shape = 'u8[32768]{0}', space=vmem, size = 0x8000, scoped, tag = 'output window, operand 0, single buffered']
    #allocation9 [shape = 'u8[1024]{0}', space=vmem, size = 0x400, scoped, tag = 'output window, operand 1, single buffered']
    #allocation10 [shape = 's32[1]{0}', space=sflag, size = 0x4, scoped, tag = 'scoped memory for tpu_custom_call.1']
    %13 = vsyncpa [#allocation3], 0
    %14 = vsyncpa [#allocation6], 0
    %15 = vsyncpa [#allocation4], 0
    %16 = vsyncpa [#allocation10], 0
    // Predicated region
    $region2: #{tpu_custom_call.1} parent=1 // pred_check
      _
    $region3: #{tpu_custom_call.1} parent=1 // pred_check_branch
      %18 = sbr.rel (0) target = $region5
    $region4: #{tpu_custom_call.1} parent=1 // pred_region
      _
    $region5: #{tpu_custom_call.1} parent=1 // pred_fallthru
      _
    // Predicated region
    $region6: #{tpu_custom_call.1} parent=1 // pred_check
      _
    $region7: #{tpu_custom_call.1} parent=1 // pred_check_branch
      %20 = sbr.rel (0) target = $region9
    $region8: #{tpu_custom_call.1} parent=1 // pred_region
      %22 = vsyncadd [#allocation3], 0
      %s23 = sshll.u32 %s1, 4
      %s24 = int_to_ptr.hbm [resolvable:$true] %s23
      %s25 = sshll.u32 [#allocation2], 4
      %s26 = int_to_ptr.vmem [resolvable:$true] %s25
      %31 = dma.hbm_to_vmem [thread:$0]  %s24, 256, %s26, [#allocation3], 128, 128, 8
    $region9: #{tpu_custom_call.1} parent=1 // pred_fallthru
      _
    // Predicated region
    $region10: #{tpu_custom_call.1} parent=1 // pred_check
      _
    $region11: #{tpu_custom_call.1} parent=1 // pred_check_branch
      %33 = sbr.rel (0) target = $region13
    $region12: #{tpu_custom_call.1} parent=1 // pred_region
      %35 = vsyncadd [#allocation6], 0
      %s36 = sshll.u32 %s2, 4
      %s37 = int_to_ptr.hbm [resolvable:$true] %s36
      %s38 = sshll.u32 [#allocation5], 4
      %s39 = int_to_ptr.vmem [resolvable:$true] %s38
      %44 = dma.hbm_to_vmem [thread:$0]  %s37, 512, %s39, [#allocation6], 128, 128, 8
    $region13: #{tpu_custom_call.1} parent=1 // pred_fallthru
      _
    // Predicated region
    $region14: #{tpu_custom_call.1} parent=1 // pred_check
      _
    $region15: #{tpu_custom_call.1} parent=1 // pred_check_branch
      %46 = sbr.rel (0) target = $region17
    $region16: #{tpu_custom_call.1} parent=1 // pred_region
      _
    $region17: #{tpu_custom_call.1} parent=1 // pred_fallthru
      _
    // Predicated region
    $region18: #{tpu_custom_call.1} parent=1 // pred_check
      _
    $region19: #{tpu_custom_call.1} parent=1 // pred_check_branch
      %48 = sbr.rel (0) target = $region21
    $region20: #{tpu_custom_call.1} parent=1 // pred_region
      %50 = vsyncadd [#allocation6], 0
      %s51 = sshll.u32 %s4, 4
      %s52 = int_to_ptr.hbm [resolvable:$true] %s51
      %s53 = sshll.u32 [#allocation7], 4
      %s54 = int_to_ptr.vmem [resolvable:$true] %s53
      %59 = dma.hbm_to_vmem [thread:$0]  %s52, 512, %s54, [#allocation6], 256, 256, 16
    $region21: #{tpu_custom_call.1} parent=1 // pred_fallthru
      _
    // Predicated region
    $region22: #{tpu_custom_call.1} parent=1 // pred_check
      _
    $region23: #{tpu_custom_call.1} parent=1 // pred_check_branch
      %61 = sbr.rel (0) target = $region25
    $region24: #{tpu_custom_call.1} parent=1 // pred_region
      _
    $region25: #{tpu_custom_call.1} parent=1 // pred_fallthru
      _
    // Predicated region
    $region26: #{tpu_custom_call.1} parent=1 // pred_check
      _
    $region27: #{tpu_custom_call.1} parent=1 // pred_check_branch
      %63 = sbr.rel (0) target = $region29
    $region28: #{tpu_custom_call.1} parent=1 // pred_region
      %65 = dma.done [#allocation3], 256
    $region29: #{tpu_custom_call.1} parent=1 // pred_fallthru
      _
    // Predicated region
    $region30: #{tpu_custom_call.1} parent=1 // pred_check
      _
    $region31: #{tpu_custom_call.1} parent=1 // pred_check_branch
      %67 = sbr.rel (0) target = $region33
    $region32: #{tpu_custom_call.1} parent=1 // pred_region
      %69 = dma.done [#allocation6], 512
    $region33: #{tpu_custom_call.1} parent=1 // pred_fallthru
      _
    // Predicated region
    $region34: #{tpu_custom_call.1} parent=1 // pred_check
      _
    $region35: #{tpu_custom_call.1} parent=1 // pred_check_branch
      %71 = sbr.rel (0) target = $region37
    $region36: #{tpu_custom_call.1} parent=1 // pred_region
      %73 = dma.done [#allocation6], 512
    $region37: #{tpu_custom_call.1} parent=1 // pred_fallthru
      _
    %v74 = vld [vmem:[%s0] sm:$0xff]
    %v75 = vld [vmem:[%s0 + $0x8] sm:$0xff]
    %v76 = vld [vmem:[%s0 + $0x10] sm:$0xff]
    %v77 = vld [vmem:[%s0 + $0x18] sm:$0xff]
    %v78 = vld [vmem:[%s0 + $0x20] sm:$0xff]
    %v79 = vld [vmem:[%s0 + $0x28] sm:$0xff]
    %v80 = vld [vmem:[%s0 + $0x30] sm:$0xff]
    %v81 = vld [vmem:[%s0 + $0x38] sm:$0xff]
    %v82 = vld [vmem:[#allocation5] sm:$0xff]
    %v83 = vld [vmem:[#allocation5 + $0x8] sm:$0xff]
    %v84 = vld [vmem:[#allocation5 + $0x10] sm:$0xff]
    %v85 = vld [vmem:[#allocation5 + $0x18] sm:$0xff]
    %v86 = vld [vmem:[%s3] sm:$0xff]
    %v87 = vld [vmem:[%s3 + $0x8] sm:$0xff]
    %v88 = vld [vmem:[%s3 + $0x10] sm:$0xff]
    %v89 = vld [vmem:[%s3 + $0x18] sm:$0xff]
    %91 = vset.pattern.permute.xlu0 0
    %92 = vperm.xlu0 %91, %v86
    %v93 = vpop.permute.xlu0 %92
    %96 = vset.pattern.permute.xlu0 0
    %97 = vperm.xlu0 %96, %v87
    %v98 = vpop.permute.xlu0 %97
    %101 = vset.pattern.permute.xlu0 0
    %102 = vperm.xlu0 %101, %v88
    %v103 = vpop.permute.xlu0 %102
    %106 = vset.pattern.permute.xlu0 0
    %107 = vperm.xlu0 %106, %v89
    %v108 = vpop.permute.xlu0 %107
    %vm110 = vcmask 261120
    %v112 = vsel %vm110, %v82, 0
    %v115 = vsel %vm110, %v83, 0
    %v118 = vsel %vm110, %v84, 0
    %v121 = vsel %vm110, %v85, 0
    %123 = vmatpush.msra.mxu0 0.0
    %124 = vmatpush.msra.mxu0 0.0
    %125 = vmatpush.msra.mxu0 0.0
    %126 = vmatpush.msra.mxu0 0.0
    %127 = vmatpush.msra.mxu0 0.0
    %128 = vmatpush.msra.mxu0 0.0
    %129 = vmatpush.msra.mxu0 0.0
    %130 = vmatpush.msra.mxu0 0.0
    %131 = vmatpush.msra.mxu0 0.0
    %132 = vmatpush.msra.mxu0 0.0
    %133 = vmatpush.msra.mxu0 0.0
    %134 = vmatpush.msra.mxu0 0.0
    %135 = vmatpush.msra.mxu0 %v80
    %136 = vmatpush.msra.mxu0 %v78
    %137 = vmatpush.msra.mxu0 %v76
    %138 = vmatpush.msra.mxu0 %v74
    %139 = vmatmul.f32.gmra.mxu0 %v112
    %v140 = vpop.f32.mrf.mxu0
    %v141 = vadd.f32 %v93, %v140
    %142 = vmatmul.f32.gmra.mxu0 %v115
    %v143 = vpop.f32.mrf.mxu0
    %v144 = vadd.f32 %v98, %v143
    %145 = vmatmul.f32.gmra.mxu0 %v118
    %v146 = vpop.f32.mrf.mxu0
    %v147 = vadd.f32 %v103, %v146
    %148 = vmatmul.f32.gmra.mxu0 %v121
    %v149 = vpop.f32.mrf.mxu0
    %v150 = vadd.f32 %v108, %v149
    %151 = vdwg.mxu0
    %152 = vmatpush.msra.mxu0 0.0
    %153 = vmatpush.msra.mxu0 0.0
    %154 = vmatpush.msra.mxu0 0.0
    %155 = vmatpush.msra.mxu0 0.0
    %156 = vmatpush.msra.mxu0 0.0
    %157 = vmatpush.msra.mxu0 0.0
    %158 = vmatpush.msra.mxu0 0.0
    %159 = vmatpush.msra.mxu0 0.0
    %160 = vmatpush.msra.mxu0 0.0
    %161 = vmatpush.msra.mxu0 0.0
    %162 = vmatpush.msra.mxu0 0.0
    %163 = vmatpush.msra.mxu0 0.0
    %164 = vmatpush.msra.mxu0 %v81
    %165 = vmatpush.msra.mxu0 %v79
    %166 = vmatpush.msra.mxu0 %v77
    %167 = vmatpush.msra.mxu0 %v75
    %168 = vmatmul.f32.gmra.mxu0 %v112
    %v169 = vpop.f32.mrf.mxu0
    %v170 = vadd.f32 %v93, %v169
    %171 = vmatmul.f32.gmra.mxu0 %v115
    %v172 = vpop.f32.mrf.mxu0
    %v173 = vadd.f32 %v98, %v172
    %174 = vmatmul.f32.gmra.mxu0 %v118
    %v175 = vpop.f32.mrf.mxu0
    %v176 = vadd.f32 %v103, %v175
    %177 = vmatmul.f32.gmra.mxu0 %v121
    %v178 = vpop.f32.mrf.mxu0
    %v179 = vadd.f32 %v108, %v178
    %180 = vdwg.mxu0
    %v181 = vld [vmem:[#allocation2] sm:$0xff]
    %v182 = vld [vmem:[#allocation2 + $0x8] sm:$0xff]
    %183 = vxpose.xlu0.b32.start [1/16] %v181, 128
    %184 = vxpose.xlu0.b32.cont [2/16] %v182, 128
    %185 = vxpose.xlu0.b32.cont [3/16] 0.0, 128
    %186 = vxpose.xlu0.b32.cont [4/16] 0.0, 128
    %187 = vxpose.xlu0.b32.cont [5/16] 0.0, 128
    %188 = vxpose.xlu0.b32.cont [6/16] 0.0, 128
    %189 = vxpose.xlu0.b32.cont [7/16] 0.0, 128
    %190 = vxpose.xlu0.b32.cont [8/16] 0.0, 128
    %191 = vxpose.xlu0.b32.cont [9/16] 0.0, 128
    %192 = vxpose.xlu0.b32.cont [10/16] 0.0, 128
    %193 = vxpose.xlu0.b32.cont [11/16] 0.0, 128
    %194 = vxpose.xlu0.b32.cont [12/16] 0.0, 128
    %195 = vxpose.xlu0.b32.cont [13/16] 0.0, 128
    %196 = vxpose.xlu0.b32.cont [14/16] 0.0, 128
    %197 = vxpose.xlu0.b32.cont [15/16] 0.0, 128
    %198 = vxpose.xlu0.b32.end [16/16] 0.0, 128
    %v199 = vpop.trf.xlu0
    %v200 = vpop.trf.xlu0
    %v201 = vpop.trf.xlu0
    %v202 = vpop.trf.xlu0
    %v203 = vpop.trf.xlu0
    %v204 = vpop.trf.xlu0
    %v205 = vpop.trf.xlu0
    %v206 = vpop.trf.xlu0
    %v207 = vpop.trf.xlu0
    %v208 = vpop.trf.xlu0
    %v209 = vpop.trf.xlu0
    %v210 = vpop.trf.xlu0
    %v211 = vpop.trf.xlu0
    %v212 = vpop.trf.xlu0
    %v213 = vpop.trf.xlu0
    %v214 = vpop.trf.xlu0
    %v215 = vld [vmem:[#allocation7] sm:$0xff]
    %v216 = vld [vmem:[#allocation7 + $0x8] sm:$0xff]
    %v217 = vld [vmem:[#allocation7 + $0x10] sm:$0xff]
    %v218 = vld [vmem:[#allocation7 + $0x18] sm:$0xff]
    %vm219 = vcmask 130048
    %v221 = vsel %vm219, %v199, 0
    %v224 = vsel %vm219, %v200, 0
    %v227 = vsel %vm219, %v201, 0
    %v230 = vsel %vm219, %v202, 0
    %232 = vmatpush.msra.mxu0 0.0
    %233 = vmatpush.msra.mxu0 0.0
    %234 = vmatpush.msra.mxu0 0.0
    %235 = vmatpush.msra.mxu0 0.0
    %236 = vmatpush.msra.mxu0 0.0
    %237 = vmatpush.msra.mxu0 0.0
    %238 = vmatpush.msra.mxu0 0.0
    %239 = vmatpush.msra.mxu0 0.0
    %240 = vmatpush.msra.mxu0 0.0
    %241 = vmatpush.msra.mxu0 0.0
    %242 = vmatpush.msra.mxu0 0.0
    %243 = vmatpush.msra.mxu0 0.0
    %244 = vmatpush.msra.mxu0 0.0
    %245 = vmatpush.msra.mxu0 0.0
    %246 = vmatpush.msra.mxu0 %v217
    %247 = vmatpush.msra.mxu0 %v215
    %248 = vmatmul.f32.gmra.mxu0 %v221
    %v249 = vpop.f32.mrf.mxu0
    %v250 = vadd.f32 0.0, %v249
    %251 = vmatmul.f32.gmra.mxu0 %v224
    %v252 = vpop.f32.mrf.mxu0
    %v253 = vadd.f32 0.0, %v252
    %254 = vmatmul.f32.gmra.mxu0 %v227
    %v255 = vpop.f32.mrf.mxu0
    %v256 = vadd.f32 0.0, %v255
    %257 = vmatmul.f32.gmra.mxu0 %v230
    %v258 = vpop.f32.mrf.mxu0
    %v259 = vadd.f32 0.0, %v258
    %260 = vdwg.mxu0
    %261 = vmatpush.msra.mxu0 0.0
    %262 = vmatpush.msra.mxu0 0.0
    %263 = vmatpush.msra.mxu0 0.0
    %264 = vmatpush.msra.mxu0 0.0
    %265 = vmatpush.msra.mxu0 0.0
    %266 = vmatpush.msra.mxu0 0.0
    %267 = vmatpush.msra.mxu0 0.0
    %268 = vmatpush.msra.mxu0 0.0
    %269 = vmatpush.msra.mxu0 0.0
    %270 = vmatpush.msra.mxu0 0.0
    %271 = vmatpush.msra.mxu0 0.0
    %272 = vmatpush.msra.mxu0 0.0
    %273 = vmatpush.msra.mxu0 0.0
    %274 = vmatpush.msra.mxu0 0.0
    %275 = vmatpush.msra.mxu0 %v218
    %276 = vmatpush.msra.mxu0 %v216
    %277 = vmatmul.f32.gmra.mxu0 %v221
    %v278 = vpop.f32.mrf.mxu0
    %v279 = vadd.f32 0.0, %v278
    %280 = vmatmul.f32.gmra.mxu0 %v224
    %v281 = vpop.f32.mrf.mxu0
    %v282 = vadd.f32 0.0, %v281
    %283 = vmatmul.f32.gmra.mxu0 %v227
    %v284 = vpop.f32.mrf.mxu0
    %v285 = vadd.f32 0.0, %v284
    %286 = vmatmul.f32.gmra.mxu0 %v230
    %v287 = vpop.f32.mrf.mxu0
    %v288 = vadd.f32 0.0, %v287
    %289 = vdwg.mxu0
    %v290 = vadd.f32 %v141, %v250
    %v291 = vadd.f32 %v170, %v279
    %v292 = vadd.f32 %v144, %v253
    %v293 = vadd.f32 %v173, %v282
    %v294 = vadd.f32 %v147, %v256
    %v295 = vadd.f32 %v176, %v285
    %v296 = vadd.f32 %v150, %v259
    %v297 = vadd.f32 %v179, %v288
    %v298 = vtanh.pop %v290
    %v299 = vtanh.pop %v291
    %v300 = vtanh.pop %v292
    %v301 = vtanh.pop %v293
    %v302 = vtanh.pop %v294
    %v303 = vtanh.pop %v295
    %v304 = vtanh.pop %v296
    %v305 = vtanh.pop %v297
    %v306 = vld [vmem:[%s5] sm:$0xff]
    %v307 = vld [vmem:[%s5 + $0x8] sm:$0xff]
    %v308 = vld [vmem:[%s5 + $0x10] sm:$0xff]
    %v309 = vld [vmem:[%s5 + $0x18] sm:$0xff]
    %311 = vset.pattern.permute.xlu0 0
    %312 = vperm.xlu0 %311, %v306
    %v313 = vpop.permute.xlu0 %312
    %316 = vset.pattern.permute.xlu0 0
    %317 = vperm.xlu0 %316, %v307
    %v318 = vpop.permute.xlu0 %317
    %321 = vset.pattern.permute.xlu0 0
    %322 = vperm.xlu0 %321, %v308
    %v323 = vpop.permute.xlu0 %322
    %326 = vset.pattern.permute.xlu0 0
    %327 = vperm.xlu0 %326, %v309
    %v328 = vpop.permute.xlu0 %327
    %v330 = vmul.f32 %v313, %v298
    %v331 = vmul.f32 %v313, %v299
    %v332 = vmul.f32 %v318, %v300
    %v333 = vmul.f32 %v318, %v301
    %v334 = vmul.f32 %v323, %v302
    %v335 = vmul.f32 %v323, %v303
    %v336 = vmul.f32 %v328, %v304
    %v337 = vmul.f32 %v328, %v305
    %v338 = vadd.f32 %v330, %v332
    %v339 = vadd.f32 %v338, %v334
    %v340 = vadd.f32 %v339, %v336
    %v341 = vrot.slane %v340, 4
    %v342 = vadd.f32 %v340, %v341
    %v343 = vrot.slane %v342, 2
    %v344 = vadd.f32 %v342, %v343
    %v345 = vrot.slane %v344, 1
    %v346 = vadd.f32 %v344, %v345
    %v347 = vadd.f32 %v331, %v333
    %v348 = vadd.f32 %v347, %v335
    %v349 = vadd.f32 %v348, %v337
    %v350 = vrot.slane %v349, 4
    %v351 = vadd.f32 %v349, %v350
    %v352 = vrot.slane %v351, 2
    %v353 = vadd.f32 %v351, %v352
    %v354 = vrot.slane %v353, 1
    %v355 = vadd.f32 %v353, %v354
    %356 = vst [vmem:[#allocation8] sm:$0xff] %v141
    %357 = vst [vmem:[#allocation8 + $0x8] sm:$0xff] %v170
    %358 = vst [vmem:[#allocation8 + $0x10] sm:$0xff] %v144
    %359 = vst [vmem:[#allocation8 + $0x18] sm:$0xff] %v173
    %360 = vst [vmem:[#allocation8 + $0x20] sm:$0xff] %v147
    %361 = vst [vmem:[#allocation8 + $0x28] sm:$0xff] %v176
    %362 = vst [vmem:[#allocation8 + $0x30] sm:$0xff] %v150
    %363 = vst [vmem:[#allocation8 + $0x38] sm:$0xff] %v179
    %v366 = vrot.slane %v355, 7
    %vm367 = vcmask 1040384
    %v368 = vsel %vm367, %v346, %v366
    %v370 = vlaneseq
    %vm371 = vcmp.ge.s32.totalorder %v370, 0
    %vm372 = vcmp.lt.s32.totalorder %v370, 256
    %vm373 = vmand %vm371, %vm372
    %374 = vst.msk [vmem:[#allocation9] sm:$0x3] %vm373, %v368
    // Predicated region
    $region38: #{tpu_custom_call.1} parent=1 // pred_check
      _
    $region39: #{tpu_custom_call.1} parent=1 // pred_check_branch
      %376 = sbr.rel (0) target = $region41
    $region40: #{tpu_custom_call.1} parent=1 // pred_region
      %378 = vsyncadd [#allocation4], 0
      %s379 = sshll.u32 [#allocation8], 4
      %s380 = int_to_ptr.vmem [resolvable:$true] %s379
      %s381 = sshll.u32 %s6, 4
      %s382 = int_to_ptr.hbm [resolvable:$true] %s381
      %387 = dma.vmem_to_hbm [thread:$0]  %s380, 1024, %s382, [#allocation4], 256, 256, 16
    $region41: #{tpu_custom_call.1} parent=1 // pred_fallthru
      _
    // Predicated region
    $region42: #{tpu_custom_call.1} parent=1 // pred_check
      _
    $region43: #{tpu_custom_call.1} parent=1 // pred_check_branch
      %389 = sbr.rel (0) target = $region45
    $region44: #{tpu_custom_call.1} parent=1 // pred_region
      %391 = vsyncadd [#allocation10], 0
      %s393 = sshll.u32 [#allocation9], 4
      %s394 = int_to_ptr.vmem [resolvable:$true] %s393
      %s395 = sshll.u32 %s7, 4
      %s396 = int_to_ptr.hbm [resolvable:$true] %s395
      %398 = dma.vmem_to_hbm [thread:$0]  %s394, 32, %s396, [#allocation10]
    $region45: #{tpu_custom_call.1} parent=1 // pred_fallthru
      _
    // Predicated region
    $region46: #{tpu_custom_call.1} parent=1 // pred_check
      _
    $region47: #{tpu_custom_call.1} parent=1 // pred_check_branch
      %400 = sbr.rel (0) target = $region49
    $region48: #{tpu_custom_call.1} parent=1 // pred_region
      %402 = dma.done [#allocation4], 1024
    $region49: #{tpu_custom_call.1} parent=1 // pred_fallthru
      _
    // Predicated region
    $region50: #{tpu_custom_call.1} parent=1 // pred_check
      _
    $region51: #{tpu_custom_call.1} parent=1 // pred_check_branch
      %404 = sbr.rel (0) target = $region53
    $region52: #{tpu_custom_call.1} parent=1 // pred_region
      %406 = dma.done [#allocation10], 32
    $region53: #{tpu_custom_call.1} parent=1 // pred_fallthru
      _
    %407 = vsyncpa [#allocation3], 1
    %408 = vsyncpa [#allocation6], 1
    %409 = vsyncpa [#allocation4], 1
    %410 = vsyncpa [#allocation10], 1

</llo_original>
